<compile_context>
chip_gen: v7x
topology: tpu7x:2x2x1
jax: 0.10.0
libtpu: 0.0.40
codegen_flags: <defaults>
</compile_context>

<pallas_src>
import functools

import jax
import jax.numpy as jnp
from jax.experimental import pallas as pl
from jax.experimental.pallas import tpu as pltpu

KSIZE = 3  # kernel_size=3, padding=1, stride=1, dilation=1


def _sepconv_kernel(rc_ref, x_ref, wdw_ref, wpw_ref, bias_ref, o_ref, acc_ref,
                    *, H, W):
    """One (batch, cin-tile) grid step.

    rc_ref  : (2, H*W) int32   row / col index of each flattened position
    x_ref   : (1, TC, H*W)     input tile (channels on sublanes, spatial on lanes)
    wdw_ref : (TC, 9)          BN-scale-folded depthwise weights, tap = kh*3+kw
    wpw_ref : (Cout, TC)       pointwise (1x1 conv) weights
    bias_ref: (Cout, 1)        folded BN shift projected through the pointwise
    o_ref   : (1, Cout, H*W)   output tile (written on the last cin step)
    acc_ref : (Cout, H*W) f32  accumulator across cin tiles
    """
    hw = H * W
    ci = pl.program_id(1)

    x = x_ref[0].astype(jnp.float32)          # (TC, HW)
    row = rc_ref[0:1, :]                      # (1, HW) int32
    col = rc_ref[1:2, :]                      # (1, HW) int32

    # ---- depthwise 3x3: lane rolls (XLU) + border masks ----
    dw_out = None
    for dh in (-1, 0, 1):
        for dw in (-1, 0, 1):
            tap = (dh + 1) * 3 + (dw + 1)          # == kh*3 + kw
            shift = dh * W + dw                    # offset in flattened space
            src = x if shift == 0 else pltpu.roll(x, (-shift) % hw, axis=1)
            if not (dh == 0 and dw == 0):
                valid = ((row + dh >= 0) & (row + dh < H) &
                         (col + dw >= 0) & (col + dw < W))
                src = jnp.where(valid, src, 0.0)
            w_tap = wdw_ref[:, tap:tap + 1].astype(jnp.float32)   # (TC, 1)
            term = src * w_tap
            dw_out = term if dw_out is None else dw_out + term

    # ---- pointwise 1x1 conv: MXU matmul, accumulated over cin tiles ----
    @pl.when(ci == 0)
    def _():
        acc_ref[...] = jnp.zeros_like(acc_ref)

    acc_ref[...] += jnp.dot(wpw_ref[...].astype(jnp.float32), dw_out,
                            preferred_element_type=jnp.float32)

    @pl.when(ci == pl.num_programs(1) - 1)
    def _():
        o_ref[0] = (acc_ref[...] + bias_ref[...]).astype(o_ref.dtype)


def _pick_cin_tile(cin):
    # The wpw block is (Cout, TC); its last dim must be a multiple of 128 or
    # the full Cin, so only 128-multiples are legal channel tiles.
    if cin > 128 and cin % 128 == 0:
        return 128
    return cin


@jax.jit
def separable_conv2d(x_nchw, w_dw, gamma, beta, running_mean, running_var,
                     w_pw, eps=1e-5):
    """Matches SeparableConv2d.forward (eval-mode BN).

    x_nchw : (N, Cin, H, W)     float32
    w_dw   : (Cin, 1, 3, 3)     depthwise conv weight (PyTorch layout)
    w_pw   : (Cout, Cin, 1, 1)  pointwise conv weight (PyTorch layout)
    returns: (N, Cout, H, W)
    """
    N, Cin, H, W = x_nchw.shape
    Cout = w_pw.shape[0]
    HW = H * W

    # ---- fold eval-mode BatchNorm into the weights (wrapper side, tiny) ----
    scale = gamma / jnp.sqrt(running_var + eps)                    # (Cin,)
    shift = beta - running_mean * scale                            # (Cin,)
    wdw9 = (w_dw[:, 0, :, :].astype(jnp.float32)
            * scale[:, None, None]).reshape(Cin, KSIZE * KSIZE)    # (Cin, 9)
    wpw2 = w_pw[:, :, 0, 0].astype(jnp.float32)                    # (Cout, Cin)
    bias = (wpw2 @ shift.astype(jnp.float32)).reshape(Cout, 1)     # (Cout, 1)

    # Free, contiguous reshape: NCHW -> (N, C, H*W).  No pad, no transpose.
    x2 = x_nchw.reshape(N, Cin, HW)

    # row / col index of each flattened spatial position (for border masking).
    pos = jnp.arange(HW, dtype=jnp.int32)
    rc = jnp.stack([pos // W, pos % W], axis=0)                    # (2, HW)

    TC = _pick_cin_tile(Cin)
    n_ci = Cin // TC

    kernel = functools.partial(_sepconv_kernel, H=H, W=W)
    out2 = pl.pallas_call(
        kernel,
        out_shape=jax.ShapeDtypeStruct((N, Cout, HW), x_nchw.dtype),
        grid_spec=pltpu.PrefetchScalarGridSpec(
            num_scalar_prefetch=0,
            grid=(N, n_ci),
            in_specs=[
                pl.BlockSpec((2, HW), lambda n, c: (0, 0)),
                pl.BlockSpec((1, TC, HW), lambda n, c: (n, c, 0)),
                pl.BlockSpec((TC, KSIZE * KSIZE), lambda n, c: (c, 0)),
                pl.BlockSpec((Cout, TC), lambda n, c: (0, c)),
                pl.BlockSpec((Cout, 1), lambda n, c: (0, 0)),
            ],
            out_specs=pl.BlockSpec((1, Cout, HW), lambda n, c: (n, 0, 0)),
            scratch_shapes=[pltpu.VMEM((Cout, HW), jnp.float32)],
        ),
        compiler_params=pltpu.CompilerParams(
            dimension_semantics=("parallel", "arbitrary"),
            vmem_limit_bytes=48 * 1024 * 1024),
    )(rc, x2, wdw9, wpw2, bias)

    # Free, contiguous reshape back to NCHW.
    return out2.reshape(N, Cout, H, W)


def _reference(x_nchw, w_dw, gamma, beta, running_mean, running_var, w_pw,
               eps=1e-5):
    """Pure-JAX reference using lax.conv (for correctness check)."""
    Cin = x_nchw.shape[1]
    y = jax.lax.conv_general_dilated(
        x_nchw, w_dw, window_strides=(1, 1), padding=((1, 1), (1, 1)),
        dimension_numbers=("NCHW", "OIHW", "NCHW"), feature_group_count=Cin)
    sc = gamma / jnp.sqrt(running_var + eps)
    y = y * sc[None, :, None, None] + (beta - running_mean * sc)[None, :, None, None]
    y = jax.lax.conv_general_dilated(
        y, w_pw, window_strides=(1, 1), padding=((0, 0), (0, 0)),
        dimension_numbers=("NCHW", "OIHW", "NCHW"))
    return y


if __name__ == "__main__":
    N, Cin, H, W = 2, 4, 16, 16
    Cout = 8

    key = jax.random.PRNGKey(0)
    k0, k1, k2, k3, k4, k5, k6 = jax.random.split(key, 7)

    x = jax.random.normal(k0, (N, Cin, H, W), jnp.float32)
    w_dw = jax.random.normal(k1, (Cin, 1, KSIZE, KSIZE), jnp.float32) * 0.3
    w_pw = jax.random.normal(k2, (Cout, Cin, 1, 1), jnp.float32) * 0.3
    gamma = jax.random.normal(k3, (Cin,), jnp.float32) * 0.1 + 1.0
    beta = jax.random.normal(k4, (Cin,), jnp.float32) * 0.1
    running_mean = jax.random.normal(k5, (Cin,), jnp.float32) * 0.1
    running_var = jax.random.uniform(k6, (Cin,), jnp.float32, 0.5, 1.5)

    out = separable_conv2d(x, w_dw, gamma, beta, running_mean, running_var, w_pw)
    out = jax.block_until_ready(out)

    ref = _reference(x, w_dw, gamma, beta, running_mean, running_var, w_pw)
    assert out.shape == (N, Cout, H, W)
    assert jnp.allclose(out, ref, atol=1e-3, rtol=1e-3), "mismatch vs reference"

    print("KERNEL_OK")
</pallas_src>

<mosaic_0001>
module attributes {stable_mosaic.version = 11 : i64} {
  func.func @_sepconv_kernel(%arg0: i32, %arg1: i32, %arg2: memref<2x256xi32, #tpu.memory_space<vmem>>, %arg3: memref<1x4x256xf32, #tpu.memory_space<vmem>>, %arg4: memref<4x9xf32, #tpu.memory_space<vmem>>, %arg5: memref<8x4xf32, #tpu.memory_space<vmem>>, %arg6: memref<8x1xf32, #tpu.memory_space<vmem>>, %arg7: memref<1x8x256xf32, #tpu.memory_space<vmem>>, %arg8: memref<8x256xf32, #tpu.memory_space<vmem>>) attributes {dimension_semantics = [#tpu.dimension_semantics<parallel>, #tpu.dimension_semantics<arbitrary>], iteration_bounds = array<i64: 2, 1>, scalar_prefetch = 0 : i64, scratch_operands = 1 : i64, tpu.core_type = #tpu.core_type<tc>, window_params = [{pipeline_mode = #tpu.pipeline_mode<synchronous>, transform_indices = @transform_0, window_bounds = array<i64: 2, 256>}, {transform_indices = @transform_1, window_bounds = array<i64: 1, 4, 256>}, {transform_indices = @transform_2, window_bounds = array<i64: 4, 9>}, {transform_indices = @transform_3, window_bounds = array<i64: 8, 4>}, {pipeline_mode = #tpu.pipeline_mode<synchronous>, transform_indices = @transform_4, window_bounds = array<i64: 8, 1>}, {transform_indices = @transform_5, window_bounds = array<i64: 1, 8, 256>}]} {
    %c0 = arith.constant 0 : index
    %c0_0 = arith.constant 0 : index
    %c0_1 = arith.constant 0 : index
    %0 = vector.load %arg3[%c0, %c0_0, %c0_1] : memref<1x4x256xf32, #tpu.memory_space<vmem>>, vector<1x4x256xf32>
    %1 = vector.shape_cast %0 : vector<1x4x256xf32> to vector<4x256xf32>
    %c0_2 = arith.constant 0 : index
    %c0_3 = arith.constant 0 : index
    %2 = vector.load %arg2[%c0_2, %c0_3] : memref<2x256xi32, #tpu.memory_space<vmem>>, vector<1x256xi32>
    %c1 = arith.constant 1 : index
    %c0_4 = arith.constant 0 : index
    %3 = vector.load %arg2[%c1, %c0_4] : memref<2x256xi32, #tpu.memory_space<vmem>>, vector<1x256xi32>
    %c17_i32 = arith.constant 17 : i32
    %4 = tpu.dynamic_rotate %1 by %c17_i32 dim 1 : vector<4x256xf32>, i32 -> vector<4x256xf32>
    %c-1_i32 = arith.constant -1 : i32
    %5 = vector.broadcast %c-1_i32 : i32 to vector<1x256xi32>
    %6 = arith.addi %2, %5 : vector<1x256xi32>
    %c0_i32 = arith.constant 0 : i32
    %7 = vector.broadcast %c0_i32 : i32 to vector<1x256xi32>
    %8 = arith.cmpi sge, %6, %7 : vector<1x256xi32>
    %c-1_i32_5 = arith.constant -1 : i32
    %9 = vector.broadcast %c-1_i32_5 : i32 to vector<1x256xi32>
    %10 = arith.addi %2, %9 : vector<1x256xi32>
    %c16_i32 = arith.constant 16 : i32
    %11 = vector.broadcast %c16_i32 : i32 to vector<1x256xi32>
    %12 = arith.cmpi slt, %10, %11 : vector<1x256xi32>
    %13 = arith.andi %8, %12 : vector<1x256xi1>
    %c-1_i32_6 = arith.constant -1 : i32
    %14 = vector.broadcast %c-1_i32_6 : i32 to vector<1x256xi32>
    %15 = arith.addi %3, %14 : vector<1x256xi32>
    %c0_i32_7 = arith.constant 0 : i32
    %16 = vector.broadcast %c0_i32_7 : i32 to vector<1x256xi32>
    %17 = arith.cmpi sge, %15, %16 : vector<1x256xi32>
    %18 = arith.andi %13, %17 : vector<1x256xi1>
    %c-1_i32_8 = arith.constant -1 : i32
    %19 = vector.broadcast %c-1_i32_8 : i32 to vector<1x256xi32>
    %20 = arith.addi %3, %19 : vector<1x256xi32>
    %c16_i32_9 = arith.constant 16 : i32
    %21 = vector.broadcast %c16_i32_9 : i32 to vector<1x256xi32>
    %22 = arith.cmpi slt, %20, %21 : vector<1x256xi32>
    %23 = arith.andi %18, %22 : vector<1x256xi1>
    %cst = arith.constant 0.000000e+00 : f32
    %24 = vector.shape_cast %23 : vector<1x256xi1> to vector<1x256xi1>
    %25 = vector.broadcast %24 : vector<1x256xi1> to vector<4x256xi1>
    %26 = vector.broadcast %cst : f32 to vector<4x256xf32>
    %27 = arith.select %25, %4, %26 : vector<4x256xi1>, vector<4x256xf32>
    %c0_10 = arith.constant 0 : index
    %c0_11 = arith.constant 0 : index
    %28 = vector.load %arg4[%c0_10, %c0_11] : memref<4x9xf32, #tpu.memory_space<vmem>>, vector<4x1xf32>
    %29 = vector.broadcast %28 : vector<4x1xf32> to vector<4x256xf32>
    %30 = arith.mulf %27, %29 : vector<4x256xf32>
    %c16_i32_12 = arith.constant 16 : i32
    %31 = tpu.dynamic_rotate %1 by %c16_i32_12 dim 1 : vector<4x256xf32>, i32 -> vector<4x256xf32>
    %c-1_i32_13 = arith.constant -1 : i32
    %32 = vector.broadcast %c-1_i32_13 : i32 to vector<1x256xi32>
    %33 = arith.addi %2, %32 : vector<1x256xi32>
    %c0_i32_14 = arith.constant 0 : i32
    %34 = vector.broadcast %c0_i32_14 : i32 to vector<1x256xi32>
    %35 = arith.cmpi sge, %33, %34 : vector<1x256xi32>
    %c-1_i32_15 = arith.constant -1 : i32
    %36 = vector.broadcast %c-1_i32_15 : i32 to vector<1x256xi32>
    %37 = arith.addi %2, %36 : vector<1x256xi32>
    %c16_i32_16 = arith.constant 16 : i32
    %38 = vector.broadcast %c16_i32_16 : i32 to vector<1x256xi32>
    %39 = arith.cmpi slt, %37, %38 : vector<1x256xi32>
    %40 = arith.andi %35, %39 : vector<1x256xi1>
    %c0_i32_17 = arith.constant 0 : i32
    %41 = vector.broadcast %c0_i32_17 : i32 to vector<1x256xi32>
    %42 = arith.addi %3, %41 : vector<1x256xi32>
    %c0_i32_18 = arith.constant 0 : i32
    %43 = vector.broadcast %c0_i32_18 : i32 to vector<1x256xi32>
    %44 = arith.cmpi sge, %42, %43 : vector<1x256xi32>
    %45 = arith.andi %40, %44 : vector<1x256xi1>
    %c0_i32_19 = arith.constant 0 : i32
    %46 = vector.broadcast %c0_i32_19 : i32 to vector<1x256xi32>
    %47 = arith.addi %3, %46 : vector<1x256xi32>
    %c16_i32_20 = arith.constant 16 : i32
    %48 = vector.broadcast %c16_i32_20 : i32 to vector<1x256xi32>
    %49 = arith.cmpi slt, %47, %48 : vector<1x256xi32>
    %50 = arith.andi %45, %49 : vector<1x256xi1>
    %cst_21 = arith.constant 0.000000e+00 : f32
    %51 = vector.shape_cast %50 : vector<1x256xi1> to vector<1x256xi1>
    %52 = vector.broadcast %51 : vector<1x256xi1> to vector<4x256xi1>
    %53 = vector.broadcast %cst_21 : f32 to vector<4x256xf32>
    %54 = arith.select %52, %31, %53 : vector<4x256xi1>, vector<4x256xf32>
    %c0_22 = arith.constant 0 : index
    %c1_23 = arith.constant 1 : index
    %55 = vector.load %arg4[%c0_22, %c1_23] : memref<4x9xf32, #tpu.memory_space<vmem>>, vector<4x1xf32>
    %56 = vector.broadcast %55 : vector<4x1xf32> to vector<4x256xf32>
    %57 = arith.mulf %54, %56 : vector<4x256xf32>
    %58 = arith.addf %30, %57 : vector<4x256xf32>
    %c15_i32 = arith.constant 15 : i32
    %59 = tpu.dynamic_rotate %1 by %c15_i32 dim 1 : vector<4x256xf32>, i32 -> vector<4x256xf32>
    %c-1_i32_24 = arith.constant -1 : i32
    %60 = vector.broadcast %c-1_i32_24 : i32 to vector<1x256xi32>
    %61 = arith.addi %2, %60 : vector<1x256xi32>
    %c0_i32_25 = arith.constant 0 : i32
    %62 = vector.broadcast %c0_i32_25 : i32 to vector<1x256xi32>
    %63 = arith.cmpi sge, %61, %62 : vector<1x256xi32>
    %c-1_i32_26 = arith.constant -1 : i32
    %64 = vector.broadcast %c-1_i32_26 : i32 to vector<1x256xi32>
    %65 = arith.addi %2, %64 : vector<1x256xi32>
    %c16_i32_27 = arith.constant 16 : i32
    %66 = vector.broadcast %c16_i32_27 : i32 to vector<1x256xi32>
    %67 = arith.cmpi slt, %65, %66 : vector<1x256xi32>
    %68 = arith.andi %63, %67 : vector<1x256xi1>
    %c1_i32 = arith.constant 1 : i32
    %69 = vector.broadcast %c1_i32 : i32 to vector<1x256xi32>
    %70 = arith.addi %3, %69 : vector<1x256xi32>
    %c0_i32_28 = arith.constant 0 : i32
    %71 = vector.broadcast %c0_i32_28 : i32 to vector<1x256xi32>
    %72 = arith.cmpi sge, %70, %71 : vector<1x256xi32>
    %73 = arith.andi %68, %72 : vector<1x256xi1>
    %c1_i32_29 = arith.constant 1 : i32
    %74 = vector.broadcast %c1_i32_29 : i32 to vector<1x256xi32>
    %75 = arith.addi %3, %74 : vector<1x256xi32>
    %c16_i32_30 = arith.constant 16 : i32
    %76 = vector.broadcast %c16_i32_30 : i32 to vector<1x256xi32>
    %77 = arith.cmpi slt, %75, %76 : vector<1x256xi32>
    %78 = arith.andi %73, %77 : vector<1x256xi1>
    %cst_31 = arith.constant 0.000000e+00 : f32
    %79 = vector.shape_cast %78 : vector<1x256xi1> to vector<1x256xi1>
    %80 = vector.broadcast %79 : vector<1x256xi1> to vector<4x256xi1>
    %81 = vector.broadcast %cst_31 : f32 to vector<4x256xf32>
    %82 = arith.select %80, %59, %81 : vector<4x256xi1>, vector<4x256xf32>
    %c0_32 = arith.constant 0 : index
    %c2 = arith.constant 2 : index
    %83 = vector.load %arg4[%c0_32, %c2] : memref<4x9xf32, #tpu.memory_space<vmem>>, vector<4x1xf32>
    %84 = vector.broadcast %83 : vector<4x1xf32> to vector<4x256xf32>
    %85 = arith.mulf %82, %84 : vector<4x256xf32>
    %86 = arith.addf %58, %85 : vector<4x256xf32>
    %c1_i32_33 = arith.constant 1 : i32
    %87 = tpu.dynamic_rotate %1 by %c1_i32_33 dim 1 : vector<4x256xf32>, i32 -> vector<4x256xf32>
    %c0_i32_34 = arith.constant 0 : i32
    %88 = vector.broadcast %c0_i32_34 : i32 to vector<1x256xi32>
    %89 = arith.addi %2, %88 : vector<1x256xi32>
    %c0_i32_35 = arith.constant 0 : i32
    %90 = vector.broadcast %c0_i32_35 : i32 to vector<1x256xi32>
    %91 = arith.cmpi sge, %89, %90 : vector<1x256xi32>
    %c0_i32_36 = arith.constant 0 : i32
    %92 = vector.broadcast %c0_i32_36 : i32 to vector<1x256xi32>
    %93 = arith.addi %2, %92 : vector<1x256xi32>
    %c16_i32_37 = arith.constant 16 : i32
    %94 = vector.broadcast %c16_i32_37 : i32 to vector<1x256xi32>
    %95 = arith.cmpi slt, %93, %94 : vector<1x256xi32>
    %96 = arith.andi %91, %95 : vector<1x256xi1>
    %c-1_i32_38 = arith.constant -1 : i32
    %97 = vector.broadcast %c-1_i32_38 : i32 to vector<1x256xi32>
    %98 = arith.addi %3, %97 : vector<1x256xi32>
    %c0_i32_39 = arith.constant 0 : i32
    %99 = vector.broadcast %c0_i32_39 : i32 to vector<1x256xi32>
    %100 = arith.cmpi sge, %98, %99 : vector<1x256xi32>
    %101 = arith.andi %96, %100 : vector<1x256xi1>
    %c-1_i32_40 = arith.constant -1 : i32
    %102 = vector.broadcast %c-1_i32_40 : i32 to vector<1x256xi32>
    %103 = arith.addi %3, %102 : vector<1x256xi32>
    %c16_i32_41 = arith.constant 16 : i32
    %104 = vector.broadcast %c16_i32_41 : i32 to vector<1x256xi32>
    %105 = arith.cmpi slt, %103, %104 : vector<1x256xi32>
    %106 = arith.andi %101, %105 : vector<1x256xi1>
    %cst_42 = arith.constant 0.000000e+00 : f32
    %107 = vector.shape_cast %106 : vector<1x256xi1> to vector<1x256xi1>
    %108 = vector.broadcast %107 : vector<1x256xi1> to vector<4x256xi1>
    %109 = vector.broadcast %cst_42 : f32 to vector<4x256xf32>
    %110 = arith.select %108, %87, %109 : vector<4x256xi1>, vector<4x256xf32>
    %c0_43 = arith.constant 0 : index
    %c3 = arith.constant 3 : index
    %111 = vector.load %arg4[%c0_43, %c3] : memref<4x9xf32, #tpu.memory_space<vmem>>, vector<4x1xf32>
    %112 = vector.broadcast %111 : vector<4x1xf32> to vector<4x256xf32>
    %113 = arith.mulf %110, %112 : vector<4x256xf32>
    %114 = arith.addf %86, %113 : vector<4x256xf32>
    %c0_44 = arith.constant 0 : index
    %c4 = arith.constant 4 : index
    %115 = vector.load %arg4[%c0_44, %c4] : memref<4x9xf32, #tpu.memory_space<vmem>>, vector<4x1xf32>
    %116 = vector.broadcast %115 : vector<4x1xf32> to vector<4x256xf32>
    %117 = arith.mulf %1, %116 : vector<4x256xf32>
    %118 = arith.addf %114, %117 : vector<4x256xf32>
    %c255_i32 = arith.constant 255 : i32
    %119 = tpu.dynamic_rotate %1 by %c255_i32 dim 1 : vector<4x256xf32>, i32 -> vector<4x256xf32>
    %c0_i32_45 = arith.constant 0 : i32
    %120 = vector.broadcast %c0_i32_45 : i32 to vector<1x256xi32>
    %121 = arith.addi %2, %120 : vector<1x256xi32>
    %c0_i32_46 = arith.constant 0 : i32
    %122 = vector.broadcast %c0_i32_46 : i32 to vector<1x256xi32>
    %123 = arith.cmpi sge, %121, %122 : vector<1x256xi32>
    %c0_i32_47 = arith.constant 0 : i32
    %124 = vector.broadcast %c0_i32_47 : i32 to vector<1x256xi32>
    %125 = arith.addi %2, %124 : vector<1x256xi32>
    %c16_i32_48 = arith.constant 16 : i32
    %126 = vector.broadcast %c16_i32_48 : i32 to vector<1x256xi32>
    %127 = arith.cmpi slt, %125, %126 : vector<1x256xi32>
    %128 = arith.andi %123, %127 : vector<1x256xi1>
    %c1_i32_49 = arith.constant 1 : i32
    %129 = vector.broadcast %c1_i32_49 : i32 to vector<1x256xi32>
    %130 = arith.addi %3, %129 : vector<1x256xi32>
    %c0_i32_50 = arith.constant 0 : i32
    %131 = vector.broadcast %c0_i32_50 : i32 to vector<1x256xi32>
    %132 = arith.cmpi sge, %130, %131 : vector<1x256xi32>
    %133 = arith.andi %128, %132 : vector<1x256xi1>
    %c1_i32_51 = arith.constant 1 : i32
    %134 = vector.broadcast %c1_i32_51 : i32 to vector<1x256xi32>
    %135 = arith.addi %3, %134 : vector<1x256xi32>
    %c16_i32_52 = arith.constant 16 : i32
    %136 = vector.broadcast %c16_i32_52 : i32 to vector<1x256xi32>
    %137 = arith.cmpi slt, %135, %136 : vector<1x256xi32>
    %138 = arith.andi %133, %137 : vector<1x256xi1>
    %cst_53 = arith.constant 0.000000e+00 : f32
    %139 = vector.shape_cast %138 : vector<1x256xi1> to vector<1x256xi1>
    %140 = vector.broadcast %139 : vector<1x256xi1> to vector<4x256xi1>
    %141 = vector.broadcast %cst_53 : f32 to vector<4x256xf32>
    %142 = arith.select %140, %119, %141 : vector<4x256xi1>, vector<4x256xf32>
    %c0_54 = arith.constant 0 : index
    %c5 = arith.constant 5 : index
    %143 = vector.load %arg4[%c0_54, %c5] : memref<4x9xf32, #tpu.memory_space<vmem>>, vector<4x1xf32>
    %144 = vector.broadcast %143 : vector<4x1xf32> to vector<4x256xf32>
    %145 = arith.mulf %142, %144 : vector<4x256xf32>
    %146 = arith.addf %118, %145 : vector<4x256xf32>
    %c241_i32 = arith.constant 241 : i32
    %147 = tpu.dynamic_rotate %1 by %c241_i32 dim 1 : vector<4x256xf32>, i32 -> vector<4x256xf32>
    %c1_i32_55 = arith.constant 1 : i32
    %148 = vector.broadcast %c1_i32_55 : i32 to vector<1x256xi32>
    %149 = arith.addi %2, %148 : vector<1x256xi32>
    %c0_i32_56 = arith.constant 0 : i32
    %150 = vector.broadcast %c0_i32_56 : i32 to vector<1x256xi32>
    %151 = arith.cmpi sge, %149, %150 : vector<1x256xi32>
    %c1_i32_57 = arith.constant 1 : i32
    %152 = vector.broadcast %c1_i32_57 : i32 to vector<1x256xi32>
    %153 = arith.addi %2, %152 : vector<1x256xi32>
    %c16_i32_58 = arith.constant 16 : i32
    %154 = vector.broadcast %c16_i32_58 : i32 to vector<1x256xi32>
    %155 = arith.cmpi slt, %153, %154 : vector<1x256xi32>
    %156 = arith.andi %151, %155 : vector<1x256xi1>
    %c-1_i32_59 = arith.constant -1 : i32
    %157 = vector.broadcast %c-1_i32_59 : i32 to vector<1x256xi32>
    %158 = arith.addi %3, %157 : vector<1x256xi32>
    %c0_i32_60 = arith.constant 0 : i32
    %159 = vector.broadcast %c0_i32_60 : i32 to vector<1x256xi32>
    %160 = arith.cmpi sge, %158, %159 : vector<1x256xi32>
    %161 = arith.andi %156, %160 : vector<1x256xi1>
    %c-1_i32_61 = arith.constant -1 : i32
    %162 = vector.broadcast %c-1_i32_61 : i32 to vector<1x256xi32>
    %163 = arith.addi %3, %162 : vector<1x256xi32>
    %c16_i32_62 = arith.constant 16 : i32
    %164 = vector.broadcast %c16_i32_62 : i32 to vector<1x256xi32>
    %165 = arith.cmpi slt, %163, %164 : vector<1x256xi32>
    %166 = arith.andi %161, %165 : vector<1x256xi1>
    %cst_63 = arith.constant 0.000000e+00 : f32
    %167 = vector.shape_cast %166 : vector<1x256xi1> to vector<1x256xi1>
    %168 = vector.broadcast %167 : vector<1x256xi1> to vector<4x256xi1>
    %169 = vector.broadcast %cst_63 : f32 to vector<4x256xf32>
    %170 = arith.select %168, %147, %169 : vector<4x256xi1>, vector<4x256xf32>
    %c0_64 = arith.constant 0 : index
    %c6 = arith.constant 6 : index
    %171 = vector.load %arg4[%c0_64, %c6] : memref<4x9xf32, #tpu.memory_space<vmem>>, vector<4x1xf32>
    %172 = vector.broadcast %171 : vector<4x1xf32> to vector<4x256xf32>
    %173 = arith.mulf %170, %172 : vector<4x256xf32>
    %174 = arith.addf %146, %173 : vector<4x256xf32>
    %c240_i32 = arith.constant 240 : i32
    %175 = tpu.dynamic_rotate %1 by %c240_i32 dim 1 : vector<4x256xf32>, i32 -> vector<4x256xf32>
    %c1_i32_65 = arith.constant 1 : i32
    %176 = vector.broadcast %c1_i32_65 : i32 to vector<1x256xi32>
    %177 = arith.addi %2, %176 : vector<1x256xi32>
    %c0_i32_66 = arith.constant 0 : i32
    %178 = vector.broadcast %c0_i32_66 : i32 to vector<1x256xi32>
    %179 = arith.cmpi sge, %177, %178 : vector<1x256xi32>
    %c1_i32_67 = arith.constant 1 : i32
    %180 = vector.broadcast %c1_i32_67 : i32 to vector<1x256xi32>
    %181 = arith.addi %2, %180 : vector<1x256xi32>
    %c16_i32_68 = arith.constant 16 : i32
    %182 = vector.broadcast %c16_i32_68 : i32 to vector<1x256xi32>
    %183 = arith.cmpi slt, %181, %182 : vector<1x256xi32>
    %184 = arith.andi %179, %183 : vector<1x256xi1>
    %c0_i32_69 = arith.constant 0 : i32
    %185 = vector.broadcast %c0_i32_69 : i32 to vector<1x256xi32>
    %186 = arith.addi %3, %185 : vector<1x256xi32>
    %c0_i32_70 = arith.constant 0 : i32
    %187 = vector.broadcast %c0_i32_70 : i32 to vector<1x256xi32>
    %188 = arith.cmpi sge, %186, %187 : vector<1x256xi32>
    %189 = arith.andi %184, %188 : vector<1x256xi1>
    %c0_i32_71 = arith.constant 0 : i32
    %190 = vector.broadcast %c0_i32_71 : i32 to vector<1x256xi32>
    %191 = arith.addi %3, %190 : vector<1x256xi32>
    %c16_i32_72 = arith.constant 16 : i32
    %192 = vector.broadcast %c16_i32_72 : i32 to vector<1x256xi32>
    %193 = arith.cmpi slt, %191, %192 : vector<1x256xi32>
    %194 = arith.andi %189, %193 : vector<1x256xi1>
    %cst_73 = arith.constant 0.000000e+00 : f32
    %195 = vector.shape_cast %194 : vector<1x256xi1> to vector<1x256xi1>
    %196 = vector.broadcast %195 : vector<1x256xi1> to vector<4x256xi1>
    %197 = vector.broadcast %cst_73 : f32 to vector<4x256xf32>
    %198 = arith.select %196, %175, %197 : vector<4x256xi1>, vector<4x256xf32>
    %c0_74 = arith.constant 0 : index
    %c7 = arith.constant 7 : index
    %199 = vector.load %arg4[%c0_74, %c7] : memref<4x9xf32, #tpu.memory_space<vmem>>, vector<4x1xf32>
    %200 = vector.broadcast %199 : vector<4x1xf32> to vector<4x256xf32>
    %201 = arith.mulf %198, %200 : vector<4x256xf32>
    %202 = arith.addf %174, %201 : vector<4x256xf32>
    %c239_i32 = arith.constant 239 : i32
    %203 = tpu.dynamic_rotate %1 by %c239_i32 dim 1 : vector<4x256xf32>, i32 -> vector<4x256xf32>
    %c1_i32_75 = arith.constant 1 : i32
    %204 = vector.broadcast %c1_i32_75 : i32 to vector<1x256xi32>
    %205 = arith.addi %2, %204 : vector<1x256xi32>
    %c0_i32_76 = arith.constant 0 : i32
    %206 = vector.broadcast %c0_i32_76 : i32 to vector<1x256xi32>
    %207 = arith.cmpi sge, %205, %206 : vector<1x256xi32>
    %c1_i32_77 = arith.constant 1 : i32
    %208 = vector.broadcast %c1_i32_77 : i32 to vector<1x256xi32>
    %209 = arith.addi %2, %208 : vector<1x256xi32>
    %c16_i32_78 = arith.constant 16 : i32
    %210 = vector.broadcast %c16_i32_78 : i32 to vector<1x256xi32>
    %211 = arith.cmpi slt, %209, %210 : vector<1x256xi32>
    %212 = arith.andi %207, %211 : vector<1x256xi1>
    %c1_i32_79 = arith.constant 1 : i32
    %213 = vector.broadcast %c1_i32_79 : i32 to vector<1x256xi32>
    %214 = arith.addi %3, %213 : vector<1x256xi32>
    %c0_i32_80 = arith.constant 0 : i32
    %215 = vector.broadcast %c0_i32_80 : i32 to vector<1x256xi32>
    %216 = arith.cmpi sge, %214, %215 : vector<1x256xi32>
    %217 = arith.andi %212, %216 : vector<1x256xi1>
    %c1_i32_81 = arith.constant 1 : i32
    %218 = vector.broadcast %c1_i32_81 : i32 to vector<1x256xi32>
    %219 = arith.addi %3, %218 : vector<1x256xi32>
    %c16_i32_82 = arith.constant 16 : i32
    %220 = vector.broadcast %c16_i32_82 : i32 to vector<1x256xi32>
    %221 = arith.cmpi slt, %219, %220 : vector<1x256xi32>
    %222 = arith.andi %217, %221 : vector<1x256xi1>
    %cst_83 = arith.constant 0.000000e+00 : f32
    %223 = vector.shape_cast %222 : vector<1x256xi1> to vector<1x256xi1>
    %224 = vector.broadcast %223 : vector<1x256xi1> to vector<4x256xi1>
    %225 = vector.broadcast %cst_83 : f32 to vector<4x256xf32>
    %226 = arith.select %224, %203, %225 : vector<4x256xi1>, vector<4x256xf32>
    %c0_84 = arith.constant 0 : index
    %c8 = arith.constant 8 : index
    %227 = vector.load %arg4[%c0_84, %c8] : memref<4x9xf32, #tpu.memory_space<vmem>>, vector<4x1xf32>
    %228 = vector.broadcast %227 : vector<4x1xf32> to vector<4x256xf32>
    %229 = arith.mulf %226, %228 : vector<4x256xf32>
    %230 = arith.addf %202, %229 : vector<4x256xf32>
    %c0_i32_85 = arith.constant 0 : i32
    %231 = arith.cmpi eq, %arg1, %c0_i32_85 : i32
    %232 = arith.extui %231 : i1 to i32
    %c0_i32_86 = arith.constant 0 : i32
    %233 = arith.cmpi ne, %232, %c0_i32_86 : i32
    scf.if %233 {
      %cst_96 = arith.constant 0.000000e+00 : f32
      %242 = vector.broadcast %cst_96 : f32 to vector<8x256xf32>
      %c0_97 = arith.constant 0 : index
      %c0_98 = arith.constant 0 : index
      %243 = vector.load %arg8[%c0_97, %c0_98] : memref<8x256xf32, #tpu.memory_space<vmem>>, vector<8x256xf32>
      tpu.vector_store %arg8[%c0_97, %c0_98], %242 {strides = array<i32>} : memref<8x256xf32, #tpu.memory_space<vmem>>, vector<8x256xf32>,
    } else {
    }
    %c0_87 = arith.constant 0 : index
    %c0_88 = arith.constant 0 : index
    %234 = vector.load %arg8[%c0_87, %c0_88] : memref<8x256xf32, #tpu.memory_space<vmem>>, vector<8x256xf32>
    %c0_89 = arith.constant 0 : index
    %c0_90 = arith.constant 0 : index
    %235 = vector.load %arg5[%c0_89, %c0_90] : memref<8x4xf32, #tpu.memory_space<vmem>>, vector<8x4xf32>
    %cst_91 = arith.constant dense<0.000000e+00> : vector<8x256xf32>
    %236 = tpu.matmul %235, %230, %cst_91 {dimension_numbers = #tpu.dot_dimension_numbers<[1], [0], [0], [1], [0, 0, 1, 1], [], []>} : vector<8x4xf32>, vector<4x256xf32>, vector<8x256xf32> -> vector<8x256xf32>
    %237 = arith.addf %234, %236 : vector<8x256xf32>
    %c0_92 = arith.constant 0 : index
    %c0_93 = arith.constant 0 : index
    %238 = vector.load %arg8[%c0_92, %c0_93] : memref<8x256xf32, #tpu.memory_space<vmem>>, vector<8x256xf32>
    tpu.vector_store %arg8[%c0_92, %c0_93], %237 {strides = array<i32>} : memref<8x256xf32, #tpu.memory_space<vmem>>, vector<8x256xf32>,
    %c0_i32_94 = arith.constant 0 : i32
    %239 = arith.cmpi eq, %arg1, %c0_i32_94 : i32
    %240 = arith.extui %239 : i1 to i32
    %c0_i32_95 = arith.constant 0 : i32
    %241 = arith.cmpi ne, %240, %c0_i32_95 : i32
    scf.if %241 {
      %c0_96 = arith.constant 0 : index
      %c0_97 = arith.constant 0 : index
      %242 = vector.load %arg8[%c0_96, %c0_97] : memref<8x256xf32, #tpu.memory_space<vmem>>, vector<8x256xf32>
      %c0_98 = arith.constant 0 : index
      %c0_99 = arith.constant 0 : index
      %243 = vector.load %arg6[%c0_98, %c0_99] : memref<8x1xf32, #tpu.memory_space<vmem>>, vector<8x1xf32>
      %244 = vector.broadcast %243 : vector<8x1xf32> to vector<8x256xf32>
      %245 = arith.addf %242, %244 : vector<8x256xf32>
      %c0_100 = arith.constant 0 : index
      %c0_101 = arith.constant 0 : index
      %c0_102 = arith.constant 0 : index
      %246 = vector.load %arg7[%c0_100, %c0_101, %c0_102] : memref<1x8x256xf32, #tpu.memory_space<vmem>>, vector<1x8x256xf32>
      %247 = vector.shape_cast %246 : vector<1x8x256xf32> to vector<8x256xf32>
      %248 = vector.shape_cast %245 : vector<8x256xf32> to vector<1x8x256xf32>
      tpu.vector_store %arg7[%c0_100, %c0_101, %c0_102], %248 {strides = array<i32>} : memref<1x8x256xf32, #tpu.memory_space<vmem>>, vector<1x8x256xf32>,
    } else {
    }
    return
  }
  func.func @transform_0(%arg0: i32, %arg1: i32) -> (i32, i32) {
    %c0_i32 = arith.constant 0 : i32
    %c0_i32_0 = arith.constant 0 : i32
    %c0_i32_1 = arith.constant 0 : i32
    return %c0_i32, %c0_i32_0 : i32, i32
  }
  func.func @transform_1(%arg0: i32, %arg1: i32) -> (i32, i32, i32) {
    %c0_i32 = arith.constant 0 : i32
    %c0_i32_0 = arith.constant 0 : i32
    return %arg0, %arg1, %c0_i32 : i32, i32, i32
  }
  func.func @transform_2(%arg0: i32, %arg1: i32) -> (i32, i32) {
    %c0_i32 = arith.constant 0 : i32
    %c0_i32_0 = arith.constant 0 : i32
    return %arg1, %c0_i32 : i32, i32
  }
  func.func @transform_3(%arg0: i32, %arg1: i32) -> (i32, i32) {
    %c0_i32 = arith.constant 0 : i32
    %c0_i32_0 = arith.constant 0 : i32
    return %c0_i32, %arg1 : i32, i32
  }
  func.func @transform_4(%arg0: i32, %arg1: i32) -> (i32, i32) {
    %c0_i32 = arith.constant 0 : i32
    %c0_i32_0 = arith.constant 0 : i32
    %c0_i32_1 = arith.constant 0 : i32
    return %c0_i32, %c0_i32_0 : i32, i32
  }
  func.func @transform_5(%arg0: i32, %arg1: i32) -> (i32, i32, i32) {
    %c0_i32 = arith.constant 0 : i32
    %c0_i32_0 = arith.constant 0 : i32
    %c0_i32_1 = arith.constant 0 : i32
    return %arg0, %c0_i32, %c0_i32_0 : i32, i32, i32
  }
}

</mosaic_0001>

<llo_original>
// kernel: separable_conv2d.1
$region0: #{separable_conv2d.1}
  #allocation0 [shape = 'u32[]', space=smem, size = 0x4, offset = 0x4, fixed_abs, tag = 'smem constant byte address 0x4 - core index']
  #allocation1 [shape = 'u32[144,128]{1,0:T(1,128)}', space=vmem, size = 0x12000, scoped, tag = 'internal scratch']
  #allocation2 [shape = 'f32[8,256]{1,0:T(8,128)}', space=vmem, size = 0x2000, scoped, tag = 'scratch operand']
  %s0 = inlined_call_operand.vmem [shape: s32[2,256], index: 0, kind: input, shape index: {}]
  %s1 = inlined_call_operand.vmem [shape: f32[2,4,256], index: 1, kind: input, shape index: {}]
  %s2 = inlined_call_operand.vmem [shape: f32[4,9], index: 2, kind: input, shape index: {}]
  %s3 = inlined_call_operand.vmem [shape: f32[8,4], index: 3, kind: input, shape index: {}]
  %s4 = inlined_call_operand.vmem [shape: f32[8,1], index: 4, kind: input, shape index: {}]
  %s5 = inlined_call_operand.vmem [shape: f32[2,8,256], index: 5, kind: output, shape index: {}]
  %s6 = sld [smem:[#allocation0]]
  $region61: #{separable_conv2d.1} parent=0
    _
  %s8 = ssub.s32 1, %s6
  %s9 = scalar_select 0, %s8, %s6
  loop: start=0, step=1, limit=4
  $region2: #{separable_conv2d.1} parent=0 // loop_pre_header
    _
  $region3: #{separable_conv2d.1} parent=0 // loop_header
    %s11 = sphi 0, %s15
    %p12 = scmp.ge.s32.totalorder %s11, 4
    %s18 = sphi 0, %s30
    %s19 = sphi 0, %s26
    %s20 = sphi 0, %s18
    %s21 = sphi 0, %s19
    %s22 = sphi 0, %s20
    %s23 = sphi 0, %s21
    %s31 = sphi 0, %s31
    %s33 = sphi 0, %s31
    %s34 = sphi 0, %s33
    %s48 = sphi 0, %s34
    %s56 = sphi 0, %s58
    %s59 = sphi 0, %s56
    %s60 = sphi 0, %s59
    %s76 = sphi 0, %s60
    %s82 = sphi 0, %s84
    %s85 = sphi 0, %s82
    %s86 = sphi 0, %s85
    %s102 = sphi 0, %s86
    %s108 = sphi 0, %s110
    %s111 = sphi 0, %s108
    %s112 = sphi 0, %s111
    %s128 = sphi 0, %s112
    %s132 = sphi 0, %s132
    %s134 = sphi 0, %s132
    %s135 = sphi 0, %s134
    %s149 = sphi 0, %s135
    %s155 = sphi 0, %s157
    %s158 = sphi 0, %s155
    %s159 = sphi 0, %s158
    %s175 = sphi 0, %s159
  $region4: #{separable_conv2d.1} parent=0 // loop_header_branch
    %14 = sbr.rel (%p12) target = $region8
  $region5: #{separable_conv2d.1} parent=0 // loop_body
    %s16 = ssub.s32 %s11, 1
    %s17 = ssub.s32 %s11, 2
    %s24 = sadd.s32 1, %s19
    %p25 = scmp.ge.s32.totalorder %s24, 1
    %s26 = scalar_select %p25, 0, %s24
    %s27 = sadd.s32 1, %s18
    %s28 = scalar_select %p25, %s27, %s18
    %p29 = scmp.ge.s32.totalorder %s28, 2
    %s30 = scalar_select %p29, 0, %s28
    %s32 = sadd.s32 %s31, 1
    %p35 = scmp.eq.s32.totalorder %s11, 1
    %p36 = scmp.ne.s32.totalorder %s31, %s33
    %p37 = scmp.eq.s32.totalorder %s11, 0
    %p38 = por %p36, %p37
    %p39 = scmp.ne.s32.totalorder %s31, %s33
    %p40 = scmp.eq.s32.totalorder %s16, 1
    %p41 = por %p39, %p40
    %p42 = scmp.ne.s32.totalorder %s33, %s34
    %p43 = scmp.eq.s32.totalorder %s16, 0
    %p44 = por %p42, %p43
    %p45 = scmp.ne.s32.totalorder %s33, %s34
    %p46 = scmp.eq.s32.totalorder %s17, 1
    %p47 = por %p45, %p46
    %p49 = scmp.ne.s32.totalorder %s34, %s48
    %p50 = scmp.eq.s32.totalorder %s17, 0
    %p51 = por %p49, %p50
    %s52 = ssub.s32 %s18, %s30
    %s53 = ssub.s32 %s19, %s26
    %s54 = sor.u32 %s52, %s53
    %p55 = scmp.eq.s32.totalorder %s54, 0
    %s57 = sadd.s32 %s56, 1
    %s58 = scalar_select %p55, %s56, %s57
    %p61 = pneg %p55
    %p62 = scmp.eq.s32.totalorder %s11, 1
    %p63 = por %p61, %p62
    %p64 = scmp.ne.s32.totalorder %s56, %s59
    %p65 = scmp.eq.s32.totalorder %s11, 0
    %p66 = por %p64, %p65
    %p67 = scmp.ne.s32.totalorder %s56, %s59
    %p68 = scmp.eq.s32.totalorder %s16, 1
    %p69 = por %p67, %p68
    %p70 = scmp.ne.s32.totalorder %s59, %s60
    %p71 = scmp.eq.s32.totalorder %s16, 0
    %p72 = por %p70, %p71
    %p73 = scmp.ne.s32.totalorder %s59, %s60
    %p74 = scmp.eq.s32.totalorder %s17, 1
    %p75 = por %p73, %p74
    %p77 = scmp.ne.s32.totalorder %s60, %s76
    %p78 = scmp.eq.s32.totalorder %s17, 0
    %p79 = por %p77, %p78
    %s80 = ssub.s32 %s19, %s26
    %p81 = scmp.eq.s32.totalorder %s80, 0
    %s83 = sadd.s32 %s82, 1
    %s84 = scalar_select %p81, %s82, %s83
    %p87 = pneg %p81
    %p88 = scmp.eq.s32.totalorder %s11, 1
    %p89 = por %p87, %p88
    %p90 = scmp.ne.s32.totalorder %s82, %s85
    %p91 = scmp.eq.s32.totalorder %s11, 0
    %p92 = por %p90, %p91
    %p93 = scmp.ne.s32.totalorder %s82, %s85
    %p94 = scmp.eq.s32.totalorder %s16, 1
    %p95 = por %p93, %p94
    %p96 = scmp.ne.s32.totalorder %s85, %s86
    %p97 = scmp.eq.s32.totalorder %s16, 0
    %p98 = por %p96, %p97
    %p99 = scmp.ne.s32.totalorder %s85, %s86
    %p100 = scmp.eq.s32.totalorder %s17, 1
    %p101 = por %p99, %p100
    %p103 = scmp.ne.s32.totalorder %s86, %s102
    %p104 = scmp.eq.s32.totalorder %s17, 0
    %p105 = por %p103, %p104
    %s106 = ssub.s32 %s19, %s26
    %p107 = scmp.eq.s32.totalorder %s106, 0
    %s109 = sadd.s32 %s108, 1
    %s110 = scalar_select %p107, %s108, %s109
    %p113 = pneg %p107
    %p114 = scmp.eq.s32.totalorder %s11, 1
    %p115 = por %p113, %p114
    %p116 = scmp.ne.s32.totalorder %s108, %s111
    %p117 = scmp.eq.s32.totalorder %s11, 0
    %p118 = por %p116, %p117
    %p119 = scmp.ne.s32.totalorder %s108, %s111
    %p120 = scmp.eq.s32.totalorder %s16, 1
    %p121 = por %p119, %p120
    %p122 = scmp.ne.s32.totalorder %s111, %s112
    %p123 = scmp.eq.s32.totalorder %s16, 0
    %p124 = por %p122, %p123
    %p125 = scmp.ne.s32.totalorder %s111, %s112
    %p126 = scmp.eq.s32.totalorder %s17, 1
    %p127 = por %p125, %p126
    %p129 = scmp.ne.s32.totalorder %s112, %s128
    %p130 = scmp.eq.s32.totalorder %s17, 0
    %p131 = por %p129, %p130
    %s133 = sadd.s32 %s132, 1
    %p136 = scmp.eq.s32.totalorder %s11, 1
    %p137 = scmp.ne.s32.totalorder %s132, %s134
    %p138 = scmp.eq.s32.totalorder %s11, 0
    %p139 = por %p137, %p138
    %p140 = scmp.ne.s32.totalorder %s132, %s134
    %p141 = scmp.eq.s32.totalorder %s16, 1
    %p142 = por %p140, %p141
    %p143 = scmp.ne.s32.totalorder %s134, %s135
    %p144 = scmp.eq.s32.totalorder %s16, 0
    %p145 = por %p143, %p144
    %p146 = scmp.ne.s32.totalorder %s134, %s135
    %p147 = scmp.eq.s32.totalorder %s17, 1
    %p148 = por %p146, %p147
    %p150 = scmp.ne.s32.totalorder %s135, %s149
    %p151 = scmp.eq.s32.totalorder %s17, 0
    %p152 = por %p150, %p151
    %s153 = ssub.s32 %s18, %s30
    %p154 = scmp.eq.s32.totalorder %s153, 0
    %s156 = sadd.s32 %s155, 1
    %s157 = scalar_select %p154, %s155, %s156
    %p160 = pneg %p154
    %p161 = scmp.eq.s32.totalorder %s11, 1
    %p162 = por %p160, %p161
    %p163 = scmp.ne.s32.totalorder %s155, %s158
    %p164 = scmp.eq.s32.totalorder %s11, 0
    %p165 = por %p163, %p164
    %p166 = scmp.ne.s32.totalorder %s155, %s158
    %p167 = scmp.eq.s32.totalorder %s16, 1
    %p168 = por %p166, %p167
    %p169 = scmp.ne.s32.totalorder %s158, %s159
    %p170 = scmp.eq.s32.totalorder %s16, 0
    %p171 = por %p169, %p170
    %p172 = scmp.ne.s32.totalorder %s158, %s159
    %p173 = scmp.eq.s32.totalorder %s17, 1
    %p174 = por %p172, %p173
    %p176 = scmp.ne.s32.totalorder %s159, %s175
    %p177 = scmp.eq.s32.totalorder %s17, 0
    %p178 = por %p176, %p177
    %p179 = scmp.le.s32.totalorder 1, %s11
    %p180 = scmp.lt.s32.totalorder %s11, 3
    %p181 = pnand %p179, %p180
    %p182 = pneg %p181
    // Predicated region
    $region9: #{separable_conv2d.1} parent=5 // pred_check
      _
    $region10: #{separable_conv2d.1} parent=5 // pred_check_branch
      %184 = sbr.rel (%p181) target = $region12
    $region11: #{separable_conv2d.1} parent=5 // pred_region
      %s185 = ssub.s32 %s11, 1
      // Predicated region
      $region13: #{separable_conv2d.1} parent=11 // pred_check
        %p186 = pneg %p44
      $region14: #{separable_conv2d.1} parent=11 // pred_check_branch
        %188 = sbr.rel (%p186) target = $region16
      $region15: #{separable_conv2d.1} parent=11 // pred_region
        _
      $region16: #{separable_conv2d.1} parent=11 // pred_fallthru
        _
      // Predicated region
      $region17: #{separable_conv2d.1} parent=11 // pred_check
        %p189 = pneg %p98
      $region18: #{separable_conv2d.1} parent=11 // pred_check_branch
        %191 = sbr.rel (%p189) target = $region20
      $region19: #{separable_conv2d.1} parent=11 // pred_region
        %p192 = scmp.lt.s32.totalorder %s21, 0
        %s193 = scalar_select %p192, %s21, 0
        %s194 = smul.addr %s193, 4
        %s195 = scalar_lea.vmem %s2, %s194
      $region20: #{separable_conv2d.1} parent=11 // pred_fallthru
        _
      // Predicated region
      $region21: #{separable_conv2d.1} parent=11 // pred_check
        %p196 = pneg %p124
      $region22: #{separable_conv2d.1} parent=11 // pred_check_branch
        %198 = sbr.rel (%p196) target = $region24
      $region23: #{separable_conv2d.1} parent=11 // pred_region
        %p199 = scmp.lt.s32.totalorder %s21, 0
        %s200 = scalar_select %p199, %s21, 0
        %s201 = smul.addr %s200, 8
        %s202 = scalar_lea.vmem %s3, %s201
      $region24: #{separable_conv2d.1} parent=11 // pred_fallthru
        _
      // Predicated region
      $region25: #{separable_conv2d.1} parent=11 // pred_check
        %p203 = pneg %p145
      $region26: #{separable_conv2d.1} parent=11 // pred_check_branch
        %205 = sbr.rel (%p203) target = $region28
      $region27: #{separable_conv2d.1} parent=11 // pred_region
        _
      $region28: #{separable_conv2d.1} parent=11 // pred_fallthru
        _
    $region12: #{separable_conv2d.1} parent=5 // pred_fallthru
      _
    %p206 = scmp.lt.s32.totalorder %s11, 2
    // Predicated region
    $region29: #{separable_conv2d.1} parent=5 // pred_check
      %p207 = pneg %p206
    $region30: #{separable_conv2d.1} parent=5 // pred_check_branch
      %209 = sbr.rel (%p207) target = $region32
    $region31: #{separable_conv2d.1} parent=5 // pred_region
      // Predicated region
      $region33: #{separable_conv2d.1} parent=31 // pred_check
        %p210 = pneg %p66
      $region34: #{separable_conv2d.1} parent=31 // pred_check_branch
        %212 = sbr.rel (%p210) target = $region36
      $region35: #{separable_conv2d.1} parent=31 // pred_region
        %p213 = scmp.lt.s32.totalorder %s18, 1
        %s214 = scalar_select %p213, %s18, 1
        %p215 = scmp.lt.s32.totalorder %s19, 0
        %s216 = scalar_select %p215, %s19, 0
        %s217 = smul.addr %s216, 2
        %s218 = smul.addr %s214, 2
        %s219 = sadd.s32 %s217, %s218
        %s220 = smul.addr %s219, 4
        %s221 = scalar_lea.vmem %s1, %s220
      $region36: #{separable_conv2d.1} parent=31 // pred_fallthru
        _
    $region32: #{separable_conv2d.1} parent=5 // pred_fallthru
      _
    %p222 = scmp.le.s32.totalorder 1, %s11
    %p223 = scmp.lt.s32.totalorder %s11, 3
    %p224 = pnand %p222, %p223
    %p225 = pneg %p224
    // Predicated region
    $region37: #{separable_conv2d.1} parent=5 // pred_check
      _
    $region38: #{separable_conv2d.1} parent=5 // pred_check_branch
      %227 = sbr.rel (%p224) target = $region40
    $region39: #{separable_conv2d.1} parent=5 // pred_region
      %s228 = ssub.s32 %s11, 1
      %p229 = pneg %p44
      %p230 = pneg %p41
      %p231 = scmp.lt.s32.totalorder %s20, 1
      %s232 = scalar_select %p231, %s20, 1
      %p233 = scmp.lt.s32.totalorder %s21, 0
      %s234 = scalar_select %p233, %s21, 0
      %s235 = smul.addr %s234, 2
      %s236 = smul.addr %s232, 2
      %s237 = sadd.s32 %s235, %s236
      %s238 = smul.addr %s237, 4
      %s239 = scalar_lea.vmem %s1, %s238
      %p240 = pneg %p72
      %p241 = pneg %p69
      %p242 = scmp.lt.s32.totalorder %s21, 0
      %s243 = scalar_select %p242, %s21, 0
      %s244 = smul.addr %s243, 4
      %s245 = scalar_lea.vmem %s2, %s244
      %p246 = pneg %p98
      %p247 = pneg %p95
      %p248 = scmp.lt.s32.totalorder %s21, 0
      %s249 = scalar_select %p248, %s21, 0
      %s250 = smul.addr %s249, 8
      %s251 = scalar_lea.vmem %s3, %s250
      %p252 = pneg %p124
      %p253 = pneg %p121
      %p254 = pneg %p145
      %p255 = pneg %p142
      %p256 = pneg %p171
      %p257 = pneg %p168
      %p258 = scmp.lt.s32.totalorder %s20, 1
      %s259 = scalar_select %p258, %s20, 1
      %s260 = smul.addr %s259, 2
      %s261 = smul.addr %s260, 8
      %s262 = scalar_lea.vmem %s5, %s261
      %p263 = scmp.lt.s32.totalorder %s20, 1
      %s264 = scalar_select %p263, %s20, 1
      %p265 = scmp.lt.s32.totalorder %s21, 0
      %s266 = scalar_select %p265, %s21, 0
      %s267 = smul.addr %s266, 2
      %s268 = smul.addr %s264, 2
      %s269 = sadd.s32 %s267, %s268
      %s270 = smul.addr %s269, 4
      %s271 = scalar_lea.vmem %s1, %s270
      %p272 = scmp.lt.s32.totalorder %s21, 0
      %s273 = scalar_select %p272, %s21, 0
      %s274 = smul.addr %s273, 4
      %s275 = scalar_lea.vmem %s2, %s274
      %p276 = scmp.lt.s32.totalorder %s21, 0
      %s277 = scalar_select %p276, %s21, 0
      %s278 = smul.addr %s277, 8
      %s279 = scalar_lea.vmem %s3, %s278
      %p280 = scmp.lt.s32.totalorder %s20, 1
      %s281 = scalar_select %p280, %s20, 1
      %s282 = smul.addr %s281, 2
      %s283 = smul.addr %s282, 8
      %s284 = scalar_lea.vmem %s5, %s283
      %v285 = vld [vmem:[%s271] sm:$0xff]
      %v286 = vld [vmem:[%s0] ss:$2 sm:$0x3]
      %s287 = scalar_lea.vmem %s0, 1
      %v288 = vld [vmem:[%s287] ss:$2 sm:$0x3]
      %v290 = vcombine.high %v285, %v285
      %292 = vrot.lane.b32.xlu0 %v285, 17
      %v293 = vpop.permute.xlu0 %292
      %294 = vrot.lane.b32.xlu0 %v290, 17
      %v295 = vpop.permute.xlu0 %294
      %v296 = vlaneseq
      %v297 = vand.u32 %v296, 127
      %vm298 = vcmp.lt.s32.totalorder %v297, 17
      %v299 = vsel %vm298, %v293, %v295
      %v300 = vsel %vm298, %v295, %v293
      %v301 = vadd.s32 %v286, 4294967295
      %vm302 = vcmp.ge.s32.totalorder %v301, 0
      %vm303 = vcmp.lt.s32.totalorder %v301, 16
      %vm304 = vmand %vm302, %vm303
      %v305 = vadd.s32 %v288, 4294967295
      %vm306 = vcmp.ge.s32.totalorder %v305, 0
      %vm307 = vmand %vm304, %vm306
      %vm308 = vcmp.lt.s32.totalorder %v305, 16
      %vm309 = vmand %vm307, %vm308
      %v310 = vsel %vm309, 1, 0
      %v311 = vlaneseq
      %v312 = vshrl.u32 %v311, 7
      %v313 = vsub.s32 0, %v312
      %v314 = vrot.slane %v310, %v313
      %v315 = vlaneseq
      %v316 = vshrl.u32 %v315, 7
      %v317 = vsub.s32 1, %v316
      %v318 = vrot.slane %v310, %v317
      %vm319 = vcmp.eq.s32.totalorder %v314, 1
      %vm320 = vcmp.eq.s32.totalorder %v318, 1
      %v321 = vsel %vm319, %v300, 0.0
      %v322 = vsel %vm320, %v299, 0.0
      %v323 = vld [vmem:[%s275] sm:$0xf]
      %325 = vset.pattern.permute.xlu0 0
      %326 = vperm.xlu0 %325, %v323
      %v327 = vpop.permute.xlu0 %326
      %v329 = vmul.f32 %v321, %v327
      %v330 = vmul.f32 %v322, %v327
      %331 = vrot.lane.b32.xlu0 %v285, 16
      %v332 = vpop.permute.xlu0 %331
      %333 = vrot.lane.b32.xlu0 %v290, 16
      %v334 = vpop.permute.xlu0 %333
      %vm335 = vcmp.lt.s32.totalorder %v297, 16
      %v336 = vsel %vm335, %v332, %v334
      %v337 = vsel %vm335, %v334, %v332
      %vm338 = vcmp.ge.s32.totalorder %v288, 0
      %vm339 = vmand %vm304, %vm338
      %vm340 = vcmp.lt.s32.totalorder %v288, 16
      %vm341 = vmand %vm339, %vm340
      %v342 = vsel %vm341, 1, 0
      %v343 = vlaneseq
      %v344 = vshrl.u32 %v343, 7
      %v345 = vsub.s32 0, %v344
      %v346 = vrot.slane %v342, %v345
      %v347 = vlaneseq
      %v348 = vshrl.u32 %v347, 7
      %v349 = vsub.s32 1, %v348
      %v350 = vrot.slane %v342, %v349
      %vm351 = vcmp.eq.s32.totalorder %v346, 1
      %vm352 = vcmp.eq.s32.totalorder %v350, 1
      %v353 = vsel %vm351, %v337, 0.0
      %v354 = vsel %vm352, %v336, 0.0
      %v355 = vld [vmem:[%s275] sm:$0xf]
      %357 = vset.pattern.permute.xlu0 1
      %358 = vperm.xlu0 %357, %v355
      %v359 = vpop.permute.xlu0 %358
      %v361 = vmul.f32 %v353, %v359
      %v362 = vmul.f32 %v354, %v359
      %v363 = vadd.f32 %v329, %v361
      %v364 = vadd.f32 %v330, %v362
      %365 = vrot.lane.b32.xlu0 %v285, 15
      %v366 = vpop.permute.xlu0 %365
      %367 = vrot.lane.b32.xlu0 %v290, 15
      %v368 = vpop.permute.xlu0 %367
      %vm369 = vcmp.lt.s32.totalorder %v297, 15
      %v370 = vsel %vm369, %v366, %v368
      %v371 = vsel %vm369, %v368, %v366
      %v372 = vadd.s32 %v288, 1
      %vm373 = vcmp.ge.s32.totalorder %v372, 0
      %vm374 = vmand %vm304, %vm373
      %vm375 = vcmp.lt.s32.totalorder %v372, 16
      %vm376 = vmand %vm374, %vm375
      %v377 = vsel %vm376, 1, 0
      %v378 = vlaneseq
      %v379 = vshrl.u32 %v378, 7
      %v380 = vsub.s32 0, %v379
      %v381 = vrot.slane %v377, %v380
      %v382 = vlaneseq
      %v383 = vshrl.u32 %v382, 7
      %v384 = vsub.s32 1, %v383
      %v385 = vrot.slane %v377, %v384
      %vm386 = vcmp.eq.s32.totalorder %v381, 1
      %vm387 = vcmp.eq.s32.totalorder %v385, 1
      %v388 = vsel %vm386, %v371, 0.0
      %v389 = vsel %vm387, %v370, 0.0
      %v390 = vld [vmem:[%s275] sm:$0xf]
      %392 = vset.pattern.permute.xlu0 2
      %393 = vperm.xlu0 %392, %v390
      %v394 = vpop.permute.xlu0 %393
      %v396 = vmul.f32 %v388, %v394
      %v397 = vmul.f32 %v389, %v394
      %v398 = vadd.f32 %v363, %v396
      %v399 = vadd.f32 %v364, %v397
      %400 = vrot.lane.b32.xlu0 %v285, 1
      %v401 = vpop.permute.xlu0 %400
      %402 = vrot.lane.b32.xlu0 %v290, 1
      %v403 = vpop.permute.xlu0 %402
      %vm404 = vcmp.lt.s32.totalorder %v297, 1
      %v405 = vsel %vm404, %v401, %v403
      %v406 = vsel %vm404, %v403, %v401
      %vm407 = vcmp.ge.s32.totalorder %v286, 0
      %vm408 = vcmp.lt.s32.totalorder %v286, 16
      %vm409 = vmand %vm407, %vm408
      %vm410 = vmand %vm409, %vm306
      %vm411 = vmand %vm410, %vm308
      %v412 = vsel %vm411, 1, 0
      %v413 = vlaneseq
      %v414 = vshrl.u32 %v413, 7
      %v415 = vsub.s32 0, %v414
      %v416 = vrot.slane %v412, %v415
      %v417 = vlaneseq
      %v418 = vshrl.u32 %v417, 7
      %v419 = vsub.s32 1, %v418
      %v420 = vrot.slane %v412, %v419
      %vm421 = vcmp.eq.s32.totalorder %v416, 1
      %vm422 = vcmp.eq.s32.totalorder %v420, 1
      %v423 = vsel %vm421, %v406, 0.0
      %v424 = vsel %vm422, %v405, 0.0
      %v425 = vld [vmem:[%s275] sm:$0xf]
      %427 = vset.pattern.permute.xlu0 3
      %428 = vperm.xlu0 %427, %v425
      %v429 = vpop.permute.xlu0 %428
      %v431 = vmul.f32 %v423, %v429
      %v432 = vmul.f32 %v424, %v429
      %v433 = vadd.f32 %v398, %v431
      %v434 = vadd.f32 %v399, %v432
      %435 = vset.pattern.permute.xlu0 4
      %436 = vperm.xlu0 %435, %v425
      %v437 = vpop.permute.xlu0 %436
      %v439 = vunpack.c.l.s4 839922192
      %v440 = vunpack.c.0.s8 %v439
      %v441 = vlaneseq
      %v442 = vshrl.u32 %v441, 7
      %v443 = vsub.s32 %v440, %v442
      %v444 = vrot.slane %v437, %v443
      %v446 = vmul.f32 %v285, %v444
      %v448 = vcombine.high %v446, %v446
      %v450 = vadd.f32 %v433, %v446
      %v451 = vadd.f32 %v434, %v448
      %452 = vrot.lane.b32.xlu0 %v285, 127
      %v453 = vpop.permute.xlu0 %452
      %454 = vrot.lane.b32.xlu0 %v290, 127
      %v455 = vpop.permute.xlu0 %454
      %vm456 = vcmp.lt.s32.totalorder %v297, 127
      %v457 = vsel %vm456, %v453, %v455
      %v458 = vsel %vm456, %v455, %v453
      %vm459 = vmand %vm409, %vm373
      %vm460 = vmand %vm459, %vm375
      %v461 = vsel %vm460, 1, 0
      %v462 = vlaneseq
      %v463 = vshrl.u32 %v462, 7
      %v464 = vsub.s32 0, %v463
      %v465 = vrot.slane %v461, %v464
      %v466 = vlaneseq
      %v467 = vshrl.u32 %v466, 7
      %v468 = vsub.s32 1, %v467
      %v469 = vrot.slane %v461, %v468
      %vm470 = vcmp.eq.s32.totalorder %v465, 1
      %vm471 = vcmp.eq.s32.totalorder %v469, 1
      %v472 = vsel %vm470, %v457, 0.0
      %v473 = vsel %vm471, %v458, 0.0
      %v474 = vld [vmem:[%s275] sm:$0xf]
      %476 = vset.pattern.permute.xlu0 5
      %477 = vperm.xlu0 %476, %v474
      %v478 = vpop.permute.xlu0 %477
      %v480 = vmul.f32 %v472, %v478
      %v481 = vmul.f32 %v473, %v478
      %v482 = vadd.f32 %v450, %v480
      %v483 = vadd.f32 %v451, %v481
      %484 = vrot.lane.b32.xlu0 %v285, 113
      %v485 = vpop.permute.xlu0 %484
      %486 = vrot.lane.b32.xlu0 %v290, 113
      %v487 = vpop.permute.xlu0 %486
      %vm488 = vcmp.lt.s32.totalorder %v297, 113
      %v489 = vsel %vm488, %v485, %v487
      %v490 = vsel %vm488, %v487, %v485
      %v491 = vadd.s32 %v286, 1
      %vm492 = vcmp.ge.s32.totalorder %v491, 0
      %vm493 = vcmp.lt.s32.totalorder %v491, 16
      %vm494 = vmand %vm492, %vm493
      %vm495 = vmand %vm494, %vm306
      %vm496 = vmand %vm495, %vm308
      %v497 = vsel %vm496, 1, 0
      %v498 = vlaneseq
      %v499 = vshrl.u32 %v498, 7
      %v500 = vsub.s32 0, %v499
      %v501 = vrot.slane %v497, %v500
      %v502 = vlaneseq
      %v503 = vshrl.u32 %v502, 7
      %v504 = vsub.s32 1, %v503
      %v505 = vrot.slane %v497, %v504
      %vm506 = vcmp.eq.s32.totalorder %v501, 1
      %vm507 = vcmp.eq.s32.totalorder %v505, 1
      %v508 = vsel %vm506, %v489, 0.0
      %v509 = vsel %vm507, %v490, 0.0
      %v510 = vld [vmem:[%s275] sm:$0xf]
      %512 = vset.pattern.permute.xlu0 6
      %513 = vperm.xlu0 %512, %v510
      %v514 = vpop.permute.xlu0 %513
      %v516 = vmul.f32 %v508, %v514
      %v517 = vmul.f32 %v509, %v514
      %v518 = vadd.f32 %v482, %v516
      %v519 = vadd.f32 %v483, %v517
      %520 = vrot.lane.b32.xlu0 %v285, 112
      %v521 = vpop.permute.xlu0 %520
      %522 = vrot.lane.b32.xlu0 %v290, 112
      %v523 = vpop.permute.xlu0 %522
      %vm524 = vcmp.lt.s32.totalorder %v297, 112
      %v525 = vsel %vm524, %v521, %v523
      %v526 = vsel %vm524, %v523, %v521
      %vm527 = vmand %vm494, %vm338
      %vm528 = vmand %vm527, %vm340
      %v529 = vsel %vm528, 1, 0
      %v530 = vlaneseq
      %v531 = vshrl.u32 %v530, 7
      %v532 = vsub.s32 0, %v531
      %v533 = vrot.slane %v529, %v532
      %v534 = vlaneseq
      %v535 = vshrl.u32 %v534, 7
      %v536 = vsub.s32 1, %v535
      %v537 = vrot.slane %v529, %v536
      %vm538 = vcmp.eq.s32.totalorder %v533, 1
      %vm539 = vcmp.eq.s32.totalorder %v537, 1
      %v540 = vsel %vm538, %v525, 0.0
      %v541 = vsel %vm539, %v526, 0.0
      %v542 = vld [vmem:[%s275] sm:$0xf]
      %544 = vset.pattern.permute.xlu0 7
      %545 = vperm.xlu0 %544, %v542
      %v546 = vpop.permute.xlu0 %545
      %v548 = vmul.f32 %v540, %v546
      %v549 = vmul.f32 %v541, %v546
      %v550 = vadd.f32 %v518, %v548
      %v551 = vadd.f32 %v519, %v549
      %552 = vrot.lane.b32.xlu0 %v285, 111
      %v553 = vpop.permute.xlu0 %552
      %554 = vrot.lane.b32.xlu0 %v290, 111
      %v555 = vpop.permute.xlu0 %554
      %vm556 = vcmp.lt.s32.totalorder %v297, 111
      %v557 = vsel %vm556, %v553, %v555
      %v558 = vsel %vm556, %v555, %v553
      %vm559 = vmand %vm494, %vm373
      %vm560 = vmand %vm559, %vm375
      %v561 = vsel %vm560, 1, 0
      %v562 = vlaneseq
      %v563 = vshrl.u32 %v562, 7
      %v564 = vsub.s32 0, %v563
      %v565 = vrot.slane %v561, %v564
      %v566 = vlaneseq
      %v567 = vshrl.u32 %v566, 7
      %v568 = vsub.s32 1, %v567
      %v569 = vrot.slane %v561, %v568
      %vm570 = vcmp.eq.s32.totalorder %v565, 1
      %vm571 = vcmp.eq.s32.totalorder %v569, 1
      %v572 = vsel %vm570, %v557, 0.0
      %v573 = vsel %vm571, %v558, 0.0
      %v574 = vld [vmem:[%s275] sm:$0xf]
      %576 = vset.pattern.permute.xlu0 8
      %577 = vperm.xlu0 %576, %v574
      %v578 = vpop.permute.xlu0 %577
      %v580 = vmul.f32 %v572, %v578
      %v581 = vmul.f32 %v573, %v578
      %v582 = vadd.f32 %v550, %v580
      %v583 = vadd.f32 %v551, %v581
      %p584 = scmp.eq.s32.totalorder %s21, 0
      // Predicated region
      $region41: #{separable_conv2d.1} parent=39 // pred_check
        %p585 = pneg %p584
      $region42: #{separable_conv2d.1} parent=39 // pred_check_branch
        %587 = sbr.rel (%p585) target = $region44
      $region43: #{separable_conv2d.1} parent=39 // pred_region
        %588 = vst [vmem:[#allocation2] sm:$0xff] 0.0
        %589 = vst [vmem:[#allocation2 + $0x8] sm:$0xff] 0.0
      $region44: #{separable_conv2d.1} parent=39 // pred_fallthru
        _
      %v590 = vld [vmem:[#allocation2] sm:$0xff]
      %v591 = vld [vmem:[#allocation2 + $0x8] sm:$0xff]
      %v592 = vld [vmem:[%s279] sm:$0xff]
      %vm593 = vcmask 31744
      %v595 = vsel %vm593, %v592, 0
      %vm597 = vcmask 1043456
      %v599 = vsel %vm597, %v582, 0
      %v602 = vsel %vm597, %v583, 0
      %604 = vmatprep.subr.mxu0 %v602
      %605 = vmatpush1.msra.mxu0 %v599
      %606 = vmatprep.subr.mxu0 0.0
      %607 = vmatpush1.msra.mxu0 0.0
      %608 = vmatprep.subr.mxu0 0.0
      %609 = vmatpush1.msra.mxu0 0.0
      %610 = vmatprep.subr.mxu0 0.0
      %611 = vmatpush1.msra.mxu0 0.0
      %612 = vmatprep.subr.mxu0 0.0
      %613 = vmatpush1.msra.mxu0 0.0
      %614 = vmatprep.subr.mxu0 0.0
      %615 = vmatpush1.msra.mxu0 0.0
      %616 = vmatprep.subr.mxu0 0.0
      %617 = vmatpush1.msra.mxu0 0.0
      %618 = vmatprep.subr.mxu0 0.0
      %619 = vmatpush1.msra.mxu0 0.0
      %620 = vmatprep.subr.mxu0 0.0
      %621 = vmatpush1.msra.mxu0 0.0
      %622 = vmatprep.subr.mxu0 0.0
      %623 = vmatpush1.msra.mxu0 0.0
      %624 = vmatprep.subr.mxu0 0.0
      %625 = vmatpush1.msra.mxu0 0.0
      %626 = vmatprep.subr.mxu0 0.0
      %627 = vmatpush1.msra.mxu0 0.0
      %628 = vmatprep.subr.mxu0 0.0
      %629 = vmatpush1.msra.mxu0 0.0
      %630 = vmatprep.subr.mxu0 0.0
      %631 = vmatpush1.msra.mxu0 0.0
      %632 = vmatprep.subr.mxu0 0.0
      %633 = vmatpush1.msra.mxu0 0.0
      %634 = vmatprep.subr.mxu0 0.0
      %635 = vmatpush1.msra.mxu0 0.0
      %636 = vmatprep.subr.mxu0 0.0
      %637 = vmatpush1.msra.mxu0 0.0
      %638 = vmatprep.subr.mxu0 0.0
      %639 = vmatpush1.msra.mxu0 0.0
      %640 = vmatprep.subr.mxu0 0.0
      %641 = vmatpush1.msra.mxu0 0.0
      %642 = vmatprep.subr.mxu0 0.0
      %643 = vmatpush1.msra.mxu0 0.0
      %644 = vmatprep.subr.mxu0 0.0
      %645 = vmatpush1.msra.mxu0 0.0
      %646 = vmatprep.subr.mxu0 0.0
      %647 = vmatpush1.msra.mxu0 0.0
      %648 = vmatprep.subr.mxu0 0.0
      %649 = vmatpush1.msra.mxu0 0.0
      %650 = vmatprep.subr.mxu0 0.0
      %651 = vmatpush1.msra.mxu0 0.0
      %652 = vmatprep.subr.mxu0 0.0
      %653 = vmatpush1.msra.mxu0 0.0
      %654 = vmatprep.subr.mxu0 0.0
      %655 = vmatpush1.msra.mxu0 0.0
      %656 = vmatprep.subr.mxu0 0.0
      %657 = vmatpush1.msra.mxu0 0.0
      %658 = vmatprep.subr.mxu0 0.0
      %659 = vmatpush1.msra.mxu0 0.0
      %660 = vmatprep.subr.mxu0 0.0
      %661 = vmatpush1.msra.mxu0 0.0
      %662 = vmatprep.subr.mxu0 0.0
      %663 = vmatpush1.msra.mxu0 0.0
      %664 = vmatprep.subr.mxu0 0.0
      %665 = vmatpush1.msra.mxu0 0.0
      %666 = vmatprep.subr.mxu0 0.0
      %667 = vmatpush1.msra.mxu0 0.0
      %668 = vmatprep.mubr.f32.mxu0 0.0
      %669 = vmatmul.mubr.f32.gmra.mrb[0].mxu0 %v595
      %v670 = vpop.f32.mrb[0].mxu0
      %v671 = vadd.f32 0.0, %v670
      %v672 = vpop.f32.mrb[0].mxu0
      %v673 = vadd.f32 0.0, %v672
      %674 = vdwg.mxu0
      %v675 = vadd.f32 %v590, %v671
      %v676 = vadd.f32 %v591, %v673
      %677 = vst [vmem:[#allocation2] sm:$0xff] %v675
      %678 = vst [vmem:[#allocation2 + $0x8] sm:$0xff] %v676
      // Predicated region
      $region45: #{separable_conv2d.1} parent=39 // pred_check
        %p679 = pneg %p584
      $region46: #{separable_conv2d.1} parent=39 // pred_check_branch
        %681 = sbr.rel (%p679) target = $region48
      $region47: #{separable_conv2d.1} parent=39 // pred_region
        %v682 = vld [vmem:[#allocation2] sm:$0xff]
        %v683 = vld [vmem:[#allocation2 + $0x8] sm:$0xff]
        %v684 = vld [vmem:[%s4] sm:$0xff]
        %686 = vset.pattern.permute.xlu0 0
        %687 = vperm.xlu0 %686, %v684
        %v688 = vpop.permute.xlu0 %687
        %v690 = vadd.f32 %v682, %v688
        %v691 = vadd.f32 %v683, %v688
        %692 = vst [vmem:[%s284] sm:$0xff] %v690
        %693 = vst [vmem:[%s284 + $0x8] sm:$0xff] %v691
      $region48: #{separable_conv2d.1} parent=39 // pred_fallthru
        _
      %p694 = scmp.lt.s32.totalorder %s20, 1
      %s695 = scalar_select %p694, %s20, 1
      %s696 = smul.addr %s695, 2
      %s697 = smul.addr %s696, 8
      %s698 = scalar_lea.vmem %s5, %s697
      // Predicated region
      $region49: #{separable_conv2d.1} parent=39 // pred_check
        %p699 = pneg %p168
      $region50: #{separable_conv2d.1} parent=39 // pred_check_branch
        %701 = sbr.rel (%p699) target = $region52
      $region51: #{separable_conv2d.1} parent=39 // pred_region
        _
      $region52: #{separable_conv2d.1} parent=39 // pred_fallthru
        _
    $region40: #{separable_conv2d.1} parent=5 // pred_fallthru
      _
    %p702 = scmp.le.s32.totalorder 2, %s11
    // Predicated region
    $region53: #{separable_conv2d.1} parent=5 // pred_check
      %p703 = pneg %p702
    $region54: #{separable_conv2d.1} parent=5 // pred_check_branch
      %705 = sbr.rel (%p703) target = $region56
    $region55: #{separable_conv2d.1} parent=5 // pred_region
      %s706 = ssub.s32 %s11, 2
      // Predicated region
      $region57: #{separable_conv2d.1} parent=55 // pred_check
        %p707 = pneg %p174
      $region58: #{separable_conv2d.1} parent=55 // pred_check_branch
        %709 = sbr.rel (%p707) target = $region60
      $region59: #{separable_conv2d.1} parent=55 // pred_region
        %p710 = scmp.lt.s32.totalorder %s22, 1
        %s711 = scalar_select %p710, %s22, 1
        %s712 = smul.addr %s711, 2
        %s713 = smul.addr %s712, 8
        %s714 = scalar_lea.vmem %s5, %s713
      $region60: #{separable_conv2d.1} parent=55 // pred_fallthru
        _
    $region56: #{separable_conv2d.1} parent=5 // pred_fallthru
      _
  $region6: #{separable_conv2d.1} parent=0 // loop_footer
    %s15 = sadd.s32 1, %s11
  $region7: #{separable_conv2d.1} parent=0 // loop_footer_branch
    %10 = sbr.rel target = $region3
  $region8: #{separable_conv2d.1} parent=0 // loop_exit
    _

</llo_original>
